<compile_context>
chip_gen: v5e
topology: v5e:2x2
jax: 0.10.0
libtpu: 0.0.40
codegen_flags: <defaults>
</compile_context>

<pallas_src>
import functools

import jax
import jax.numpy as jnp
from jax.experimental import pallas as pl
from jax.experimental.pallas import tpu as pltpu

_LANE = 128
_HID = 50          # (50, TB) f32 activations pad to 56 sublanes; deliberately NOT padded
                   # to 64 (that would add an extra EUP vreg of tanh work per layer).
_MAX_TB = 16384    # ~1.1 KB of VMEM per batch column -> ~18 MiB at this cap.
_SAFE_TB = 8192    # above this, raise vmem_limit_bytes (v5e scoped default is 16 MiB).


def _pinn_kernel(xT_ref, w1_ref, b1_ref, w2_ref, b2_ref, w3_ref, b3_ref, o_ref,
                 *, act_dtype, mxu_precision):
    """Fused 3-layer MLP on one batch tile (batch on lanes).

    xT_ref: (2, TB)    w1: (50, 2)   b1: (50, 1)
                       w2: (50, 50)  b2: (50, 1)
                       w3: (1, 50)   b3: (1, 1)
    o_ref : (1, TB)
    """
    x0 = xT_ref[0:1, :]                                     # (1, TB)
    x1 = xT_ref[1:2, :]                                     # (1, TB)

    # Layer 1: K=2 contraction as VPU broadcast-FMAs (keeps the MXU free).  The lane
    # broadcasts of the w1 columns / b1 are grid-invariant; with fat tiles the grid has
    # only 1-2 steps, so they are no longer repeated per step.
    pre1 = w1_ref[:, 0:1] * x0 + w1_ref[:, 1:2] * x1 + b1_ref[...]        # (50, TB) f32
    h1 = jnp.tanh(pre1.astype(act_dtype))                                 # (50, TB)

    # Layer 2: (50, 50) @ (50, TB) on the MXU, f32 accumulation.
    pre2 = jnp.dot(w2_ref[...].astype(act_dtype), h1,
                   preferred_element_type=jnp.float32,
                   precision=mxu_precision) + b2_ref[...]                 # (50, TB) f32
    h2 = jnp.tanh(pre2.astype(act_dtype))                                 # (50, TB)

    # Layer 3: (1, 50) @ (50, TB) -> lane-dense (1, TB) output block.
    # TODO(synk): could be folded into a VPU multiply + sublane reduce if a bundle dump
    # shows the single-row MXU pass / MRF pop on the critical path (small win at most).
    out = jnp.dot(w3_ref[...].astype(act_dtype), h2,
                  preferred_element_type=jnp.float32,
                  precision=mxu_precision) + b3_ref[...]                  # (1, TB) f32
    o_ref[...] = out.astype(o_ref.dtype)


def _tensorcores_per_device() -> int:
    """Best-effort TensorCore count of the local device (perf heuristic only)."""
    try:
        info = pltpu.get_tpu_info()
        for name in ("num_cores", "core_count", "num_tensorcores", "tensorcore_count"):
            v = getattr(info, name, None)
            if isinstance(v, int) and v > 0:
                return v
    except Exception:
        pass
    try:
        kind = jax.devices()[0].device_kind.lower()
    except Exception:
        return 1
    # v7x has 2 TensorCores per device; v4 / v5p expose 2 via megacore.
    if ("7" in kind) or ("v4" in kind) or ("v5p" in kind):
        return 2
    return 1


def pinn_forward_t(xT, params, *, tb=4096, use_bf16=False):
    """Features-major entry point.  xT: (2, N) f32 -> returns (1, N) f32.

    Callers that already hold the collocation points in (2, N) layout should call this
    directly and skip pinn_forward's host-side transpose pass over the input.
    """
    w1, b1, w2, b2, w3, b3 = params
    d_in, N = xT.shape
    assert d_in == 2
    d_out = w3.shape[0]  # 1

    # ---- generation-aware tile-size selection --------------------------------------
    # Per-tile compute is tiny while each grid step costs ~0.35 us of pipeline overhead,
    # so never split the batch into more steps than there are TensorCores.
    tb = max(_LANE, (min(int(tb), _MAX_TB) // _LANE) * _LANE)
    n_pad = pl.cdiv(max(N, 1), _LANE) * _LANE
    tb = min(tb, n_pad)
    n_cores = _tensorcores_per_device()
    while n_cores > 1 and tb > _LANE and pl.cdiv(n_pad, tb) < n_cores:
        tb = max(_LANE, ((tb // 2) // _LANE) * _LANE)
    n_pad = pl.cdiv(n_pad, tb) * tb
    grid = (n_pad // tb,)

    # VMEM: the two (56, TB) f32 activation temporaries dominate (~1.1 KB per batch
    # column including layer-1 broadcast temps).  Default tiles fit the 16 MiB scoped
    # default everywhere; only very large caller-requested tiles need a raised limit
    # (32 MiB is still well under the 64 MiB physical VMEM of a v7x TensorCore).
    vmem_limit = (32 << 20) if tb > _SAFE_TB else None

    # ---- pad the batch (lane) axis --------------------------------------------------
    if n_pad != N:
        xT = jnp.pad(xT, ((0, 0), (0, n_pad - N)))

    act_dtype = jnp.bfloat16 if use_bf16 else jnp.float32
    # f32 path: true-f32 MXU math (matches the PyTorch reference).  bf16 path: single
    # bf16 MXU pass + bf16 tanh with f32 accumulation (fast path for v6e / v7x only).
    mxu_precision = (jax.lax.Precision.DEFAULT if use_bf16
                     else jax.lax.Precision.HIGHEST)
    kernel = functools.partial(_pinn_kernel, act_dtype=act_dtype,
                               mxu_precision=mxu_precision)

    full = lambda shape: pl.BlockSpec(shape, lambda i: (0, 0))   # weights stay resident

    cost = pl.CostEstimate(
        flops=2 * n_pad * (2 * _HID + _HID * _HID + _HID * d_out),
        transcendentals=2 * n_pad * _HID,
        bytes_accessed=4 * n_pad * (2 + d_out) + 4 * sum(int(p.size) for p in params),
    )

    out = pl.pallas_call(
        kernel,
        out_shape=jax.ShapeDtypeStruct((d_out, n_pad), jnp.float32),
        grid_spec=pltpu.PrefetchScalarGridSpec(
            num_scalar_prefetch=0,
            grid=grid,
            in_specs=[
                pl.BlockSpec((2, tb), lambda i: (0, i)),   # x tile (batch on lanes)
                full(w1.shape),                            # (50, 2)
                full(b1.shape),                            # (50, 1)
                full(w2.shape),                            # (50, 50)
                full(b2.shape),                            # (50, 1)
                full(w3.shape),                            # (1, 50)
                full(b3.shape),                            # (1, 1)
            ],
            out_specs=pl.BlockSpec((d_out, tb), lambda i: (0, i)),  # lane-dense output
        ),
        compiler_params=pltpu.CompilerParams(
            dimension_semantics=("parallel",),
            vmem_limit_bytes=vmem_limit,
        ),
        cost_estimate=cost,
    )(xT, w1, b1, w2, b2, w3, b3)

    return out[:, :N]                                       # (1, N)


def pinn_forward(x, params, *, tb=4096, use_bf16=False):
    """PyTorch-layout entry point.  x: (N, 2) f32 -> returns (N, 1) f32 (any N)."""
    N, d_in = x.shape
    assert d_in == 2
    # One host-side pass puts the batch on lanes; callers already holding (2, N) data
    # should use pinn_forward_t directly and skip it.
    out_t = pinn_forward_t(x.T, params, tb=tb, use_bf16=use_bf16)         # (1, N)
    return out_t.reshape(N, 1)


def init_params(key):
    """Deterministic init matching PyTorch nn.Linear fan-in uniform.
    Kernel layout: W as (out_features, in_features), b as (out_features, 1)."""
    k1, k2, k3, k4, k5, k6 = jax.random.split(key, 6)

    def uniform_fan_in(k, shape, fan_in):
        bound = 1.0 / jnp.sqrt(fan_in)
        return jax.random.uniform(k, shape, jnp.float32, -bound, bound)

    w1 = uniform_fan_in(k1, (50, 2), 2)     # fc1.weight
    b1 = uniform_fan_in(k2, (50, 1), 2)     # fc1.bias
    w2 = uniform_fan_in(k3, (50, 50), 50)   # fc2.weight
    b2 = uniform_fan_in(k4, (50, 1), 50)    # fc2.bias
    w3 = uniform_fan_in(k5, (1, 50), 50)    # fc3.weight
    b3 = uniform_fan_in(k6, (1, 1), 50)     # fc3.bias
    return (w1, b1, w2, b2, w3, b3)


def pinn_ref(x, params):
    """Pure-JAX reference in true f32 (TPU default matmul precision is bf16-fast)."""
    w1, b1, w2, b2, w3, b3 = params
    hp = jax.lax.Precision.HIGHEST
    h = jnp.tanh(jnp.dot(x, w1.T, precision=hp) + b1.T)
    h = jnp.tanh(jnp.dot(h, w2.T, precision=hp) + b2.T)
    return jnp.dot(h, w3.T, precision=hp) + b3.T


if __name__ == "__main__":
    key = jax.random.PRNGKey(0)
    pkey, xkey1, xkey2 = jax.random.split(key, 3)
    params = init_params(pkey)

    # Small batch of (t, x)-style collocation points, shape (8, 2).
    x_small = jax.random.normal(xkey1, (8, 2), jnp.float32)
    out_small = jax.block_until_ready(pinn_forward(x_small, params))
    ref_small = pinn_ref(x_small, params)
    assert out_small.shape == (8, 1)
    assert jnp.allclose(out_small, ref_small, atol=1e-4, rtol=1e-4)

    # Non-multiple-of-128 batch; tb=128 forces the padded, multi-tile grid path.
    x_med = jax.random.normal(xkey2, (300, 2), jnp.float32)
    out_med = jax.block_until_ready(pinn_forward(x_med, params, tb=128))
    ref_med = pinn_ref(x_med, params)
    assert out_med.shape == (300, 1)
    assert jnp.allclose(out_med, ref_med, atol=1e-4, rtol=1e-4)

    # Features-major fast path (no host-side transpose) with the default fat tile.
    out_t = jax.block_until_ready(pinn_forward_t(x_med.T, params))
    assert out_t.shape == (1, 300)
    assert jnp.allclose(out_t.reshape(300, 1), ref_med, atol=1e-4, rtol=1e-4)

    print("KERNEL_OK")
</pallas_src>

<mosaic_0001>
module attributes {stable_mosaic.version = 11 : i64} {
  func.func @_pinn_kernel(%arg0: i32, %arg1: memref<2x128xf32, #tpu.memory_space<vmem>>, %arg2: memref<50x2xf32, #tpu.memory_space<vmem>>, %arg3: memref<50x1xf32, #tpu.memory_space<vmem>>, %arg4: memref<50x50xf32, #tpu.memory_space<vmem>>, %arg5: memref<50x1xf32, #tpu.memory_space<vmem>>, %arg6: memref<1x50xf32, #tpu.memory_space<vmem>>, %arg7: memref<1x1xf32, #tpu.memory_space<vmem>>, %arg8: memref<1x128xf32, #tpu.memory_space<vmem>>) attributes {dimension_semantics = [#tpu.dimension_semantics<parallel>], iteration_bounds = array<i64: 1>, scalar_prefetch = 0 : i64, scratch_operands = 0 : i64, tpu.core_type = #tpu.core_type<tc>, window_params = [{transform_indices = @transform_0, window_bounds = array<i64: 2, 128>}, {pipeline_mode = #tpu.pipeline_mode<synchronous>, transform_indices = @transform_1, window_bounds = array<i64: 50, 2>}, {pipeline_mode = #tpu.pipeline_mode<synchronous>, transform_indices = @transform_2, window_bounds = array<i64: 50, 1>}, {pipeline_mode = #tpu.pipeline_mode<synchronous>, transform_indices = @transform_3, window_bounds = array<i64: 50, 50>}, {pipeline_mode = #tpu.pipeline_mode<synchronous>, transform_indices = @transform_4, window_bounds = array<i64: 50, 1>}, {pipeline_mode = #tpu.pipeline_mode<synchronous>, transform_indices = @transform_5, window_bounds = array<i64: 1, 50>}, {pipeline_mode = #tpu.pipeline_mode<synchronous>, transform_indices = @transform_6, window_bounds = array<i64: 1, 1>}, {transform_indices = @transform_7, window_bounds = array<i64: 1, 128>}]} {
    %c0 = arith.constant 0 : index
    %c0_0 = arith.constant 0 : index
    %0 = vector.load %arg1[%c0, %c0_0] : memref<2x128xf32, #tpu.memory_space<vmem>>, vector<1x128xf32>
    %c1 = arith.constant 1 : index
    %c0_1 = arith.constant 0 : index
    %1 = vector.load %arg1[%c1, %c0_1] : memref<2x128xf32, #tpu.memory_space<vmem>>, vector<1x128xf32>
    %c0_2 = arith.constant 0 : index
    %c0_3 = arith.constant 0 : index
    %2 = vector.load %arg2[%c0_2, %c0_3] : memref<50x2xf32, #tpu.memory_space<vmem>>, vector<50x1xf32>
    %3 = vector.broadcast %2 : vector<50x1xf32> to vector<50x128xf32>
    %4 = vector.broadcast %0 : vector<1x128xf32> to vector<50x128xf32>
    %5 = arith.mulf %3, %4 : vector<50x128xf32>
    %c0_4 = arith.constant 0 : index
    %c1_5 = arith.constant 1 : index
    %6 = vector.load %arg2[%c0_4, %c1_5] : memref<50x2xf32, #tpu.memory_space<vmem>>, vector<50x1xf32>
    %7 = vector.broadcast %6 : vector<50x1xf32> to vector<50x128xf32>
    %8 = vector.broadcast %1 : vector<1x128xf32> to vector<50x128xf32>
    %9 = arith.mulf %7, %8 : vector<50x128xf32>
    %10 = arith.addf %5, %9 : vector<50x128xf32>
    %c0_6 = arith.constant 0 : index
    %c0_7 = arith.constant 0 : index
    %11 = vector.load %arg3[%c0_6, %c0_7] : memref<50x1xf32, #tpu.memory_space<vmem>>, vector<50x1xf32>
    %12 = vector.broadcast %11 : vector<50x1xf32> to vector<50x128xf32>
    %13 = arith.addf %10, %12 : vector<50x128xf32>
    %14 = math.tanh %13 : vector<50x128xf32>
    %c0_8 = arith.constant 0 : index
    %c0_9 = arith.constant 0 : index
    %15 = vector.load %arg4[%c0_8, %c0_9] : memref<50x50xf32, #tpu.memory_space<vmem>>, vector<50x50xf32>
    %cst = arith.constant dense<0.000000e+00> : vector<50x128xf32>
    %16 = tpu.matmul %15, %14, %cst {dimension_numbers = #tpu.dot_dimension_numbers<[1], [0], [0], [1], [0, 0, 1, 1], [], []>, precision = #tpu.contract_precision<fp32>} : vector<50x50xf32>, vector<50x128xf32>, vector<50x128xf32> -> vector<50x128xf32>
    %c0_10 = arith.constant 0 : index
    %c0_11 = arith.constant 0 : index
    %17 = vector.load %arg5[%c0_10, %c0_11] : memref<50x1xf32, #tpu.memory_space<vmem>>, vector<50x1xf32>
    %18 = vector.broadcast %17 : vector<50x1xf32> to vector<50x128xf32>
    %19 = arith.addf %16, %18 : vector<50x128xf32>
    %20 = math.tanh %19 : vector<50x128xf32>
    %c0_12 = arith.constant 0 : index
    %c0_13 = arith.constant 0 : index
    %21 = vector.load %arg6[%c0_12, %c0_13] : memref<1x50xf32, #tpu.memory_space<vmem>>, vector<1x50xf32>
    %cst_14 = arith.constant dense<0.000000e+00> : vector<1x128xf32>
    %22 = tpu.matmul %21, %20, %cst_14 {dimension_numbers = #tpu.dot_dimension_numbers<[1], [0], [0], [1], [0, 0, 1, 1], [], []>, precision = #tpu.contract_precision<fp32>} : vector<1x50xf32>, vector<50x128xf32>, vector<1x128xf32> -> vector<1x128xf32>
    %c0_15 = arith.constant 0 : index
    %c0_16 = arith.constant 0 : index
    %23 = vector.load %arg7[%c0_15, %c0_16] : memref<1x1xf32, #tpu.memory_space<vmem>>, vector<1x1xf32>
    %24 = vector.broadcast %23 : vector<1x1xf32> to vector<1x128xf32>
    %25 = arith.addf %22, %24 : vector<1x128xf32>
    %c0_17 = arith.constant 0 : index
    %c0_18 = arith.constant 0 : index
    %26 = vector.load %arg8[%c0_17, %c0_18] : memref<1x128xf32, #tpu.memory_space<vmem>>, vector<1x128xf32>
    tpu.vector_store %arg8[%c0_17, %c0_18], %25 {strides = array<i32>} : memref<1x128xf32, #tpu.memory_space<vmem>>, vector<1x128xf32>,
    return
  }
  func.func @transform_0(%arg0: i32) -> (i32, i32) {
    %c0_i32 = arith.constant 0 : i32
    %c0_i32_0 = arith.constant 0 : i32
    return %c0_i32, %arg0 : i32, i32
  }
  func.func @transform_1(%arg0: i32) -> (i32, i32) {
    %c0_i32 = arith.constant 0 : i32
    %c0_i32_0 = arith.constant 0 : i32
    %c0_i32_1 = arith.constant 0 : i32
    return %c0_i32, %c0_i32_0 : i32, i32
  }
  func.func @transform_2(%arg0: i32) -> (i32, i32) {
    %c0_i32 = arith.constant 0 : i32
    %c0_i32_0 = arith.constant 0 : i32
    %c0_i32_1 = arith.constant 0 : i32
    return %c0_i32, %c0_i32_0 : i32, i32
  }
  func.func @transform_3(%arg0: i32) -> (i32, i32) {
    %c0_i32 = arith.constant 0 : i32
    %c0_i32_0 = arith.constant 0 : i32
    %c0_i32_1 = arith.constant 0 : i32
    return %c0_i32, %c0_i32_0 : i32, i32
  }
  func.func @transform_4(%arg0: i32) -> (i32, i32) {
    %c0_i32 = arith.constant 0 : i32
    %c0_i32_0 = arith.constant 0 : i32
    %c0_i32_1 = arith.constant 0 : i32
    return %c0_i32, %c0_i32_0 : i32, i32
  }
  func.func @transform_5(%arg0: i32) -> (i32, i32) {
    %c0_i32 = arith.constant 0 : i32
    %c0_i32_0 = arith.constant 0 : i32
    %c0_i32_1 = arith.constant 0 : i32
    return %c0_i32, %c0_i32_0 : i32, i32
  }
  func.func @transform_6(%arg0: i32) -> (i32, i32) {
    %c0_i32 = arith.constant 0 : i32
    %c0_i32_0 = arith.constant 0 : i32
    %c0_i32_1 = arith.constant 0 : i32
    return %c0_i32, %c0_i32_0 : i32, i32
  }
  func.func @transform_7(%arg0: i32) -> (i32, i32) {
    %c0_i32 = arith.constant 0 : i32
    %c0_i32_0 = arith.constant 0 : i32
    return %c0_i32, %arg0 : i32, i32
  }
}

</mosaic_0001>

<llo_original>
// kernel: tpu_custom_call.1
$region0: #{tpu_custom_call.1}
  #allocation0 [shape = 'u32[]', space=smem, size = 0x4, offset = 0x4, fixed_abs, tag = 'smem constant byte address 0x4 - core index']
  #allocation1 [shape = 'u32[72,128]{1,0:T(1,128)}', space=vmem, size = 0x9000, scoped, tag = 'internal scratch']
  #allocation2 [shape = 'f32[1,1]{1,0:T(1,128)S(1)}', space=vmem, size = 0x200, scoped, tag = 'scoped memory for tpu_custom_call.1']
  %s0 = inlined_call_operand.vmem [shape: f32[2,128], index: 0, kind: input, shape index: {}]
  %s1 = inlined_call_operand.vmem [shape: f32[50,2], index: 1, kind: input, shape index: {}]
  %s2 = inlined_call_operand.vmem [shape: f32[50,1], index: 2, kind: input, shape index: {}]
  %s3 = inlined_call_operand.vmem [shape: f32[50,50], index: 3, kind: input, shape index: {}]
  %s4 = inlined_call_operand.vmem [shape: f32[50,1], index: 4, kind: input, shape index: {}]
  %s5 = inlined_call_operand.vmem [shape: f32[1,50], index: 5, kind: input, shape index: {}]
  %s6 = inlined_call_operand.<no memory space> [shape: f32[1,1], index: 6, kind: input, shape index: {}]
  %s7 = inlined_call_operand.hbm [shape: f32[1,128], index: 7, kind: output, shape index: {}]
  %s8 = sld [smem:[#allocation0]]
  $region38: #{tpu_custom_call.1} parent=0
    _
  %s10 = ssub.s32 1, %s8
  %s11 = scalar_select 0, %s10, %s8
  %v12 = vstv %s6
  %13 = vst [vmem:[#allocation2] sm:$0x1] %v12
  $region1: #{tpu_custom_call.1} parent=0
    #allocation3 [shape = 'u8[512]{0}', space=vmem, size = 0x400, scoped, tag = 'output window, operand 0, single buffered']
    #allocation4 [shape = 's32[1]{0}', space=sflag, size = 0x4, scoped, tag = 'scoped memory for tpu_custom_call.1']
    %14 = vsyncpa [#allocation4], 0
    // Predicated region
    $region2: #{tpu_custom_call.1} parent=1 // pred_check
      _
    $region3: #{tpu_custom_call.1} parent=1 // pred_check_branch
      %16 = sbr.rel (0) target = $region5
    $region4: #{tpu_custom_call.1} parent=1 // pred_region
      _
    $region5: #{tpu_custom_call.1} parent=1 // pred_fallthru
      _
    // Predicated region
    $region6: #{tpu_custom_call.1} parent=1 // pred_check
      _
    $region7: #{tpu_custom_call.1} parent=1 // pred_check_branch
      %18 = sbr.rel (0) target = $region9
    $region8: #{tpu_custom_call.1} parent=1 // pred_region
      _
    $region9: #{tpu_custom_call.1} parent=1 // pred_fallthru
      _
    // Predicated region
    $region10: #{tpu_custom_call.1} parent=1 // pred_check
      _
    $region11: #{tpu_custom_call.1} parent=1 // pred_check_branch
      %20 = sbr.rel (0) target = $region13
    $region12: #{tpu_custom_call.1} parent=1 // pred_region
      _
    $region13: #{tpu_custom_call.1} parent=1 // pred_fallthru
      _
    // Predicated region
    $region14: #{tpu_custom_call.1} parent=1 // pred_check
      _
    $region15: #{tpu_custom_call.1} parent=1 // pred_check_branch
      %22 = sbr.rel (0) target = $region17
    $region16: #{tpu_custom_call.1} parent=1 // pred_region
      _
    $region17: #{tpu_custom_call.1} parent=1 // pred_fallthru
      _
    // Predicated region
    $region18: #{tpu_custom_call.1} parent=1 // pred_check
      _
    $region19: #{tpu_custom_call.1} parent=1 // pred_check_branch
      %24 = sbr.rel (0) target = $region21
    $region20: #{tpu_custom_call.1} parent=1 // pred_region
      _
    $region21: #{tpu_custom_call.1} parent=1 // pred_fallthru
      _
    // Predicated region
    $region22: #{tpu_custom_call.1} parent=1 // pred_check
      _
    $region23: #{tpu_custom_call.1} parent=1 // pred_check_branch
      %26 = sbr.rel (0) target = $region25
    $region24: #{tpu_custom_call.1} parent=1 // pred_region
      _
    $region25: #{tpu_custom_call.1} parent=1 // pred_fallthru
      _
    // Predicated region
    $region26: #{tpu_custom_call.1} parent=1 // pred_check
      _
    $region27: #{tpu_custom_call.1} parent=1 // pred_check_branch
      %28 = sbr.rel (0) target = $region29
    $region28: #{tpu_custom_call.1} parent=1 // pred_region
      _
    $region29: #{tpu_custom_call.1} parent=1 // pred_fallthru
      _
    %v29 = vld [vmem:[%s0] sm:$0x1]
    %v30 = vld [vmem:[%s0 + $0x1] sm:$0x1]
    %v31 = vld [vmem:[%s1] sm:$0xff]
    %v32 = vld [vmem:[%s1 + $0x8] sm:$0xff]
    %v33 = vld [vmem:[%s1 + $0x10] sm:$0xff]
    %v34 = vld [vmem:[%s1 + $0x18] sm:$0xff]
    %v35 = vld [vmem:[%s1 + $0x20] sm:$0xff]
    %v36 = vld [vmem:[%s1 + $0x28] sm:$0xff]
    %v37 = vld [vmem:[%s1 + $0x30] sm:$0x3]
    %39 = vset.pattern.permute.xlu0 0
    %40 = vperm.xlu0 %39, %v31
    %v41 = vpop.permute.xlu0 %40
    %44 = vset.pattern.permute.xlu0 0
    %45 = vperm.xlu0 %44, %v32
    %v46 = vpop.permute.xlu0 %45
    %49 = vset.pattern.permute.xlu0 0
    %50 = vperm.xlu0 %49, %v33
    %v51 = vpop.permute.xlu0 %50
    %54 = vset.pattern.permute.xlu0 0
    %55 = vperm.xlu0 %54, %v34
    %v56 = vpop.permute.xlu0 %55
    %59 = vset.pattern.permute.xlu0 0
    %60 = vperm.xlu0 %59, %v35
    %v61 = vpop.permute.xlu0 %60
    %64 = vset.pattern.permute.xlu0 0
    %65 = vperm.xlu0 %64, %v36
    %v66 = vpop.permute.xlu0 %65
    %69 = vset.pattern.permute.xlu0 0
    %70 = vperm.xlu0 %69, %v37
    %v71 = vpop.permute.xlu0 %70
    %v73 = vperm.slane %v29, 0
    %v74 = vmul.f32 %v41, %v73
    %v75 = vmul.f32 %v46, %v73
    %v76 = vmul.f32 %v51, %v73
    %v77 = vmul.f32 %v56, %v73
    %v78 = vmul.f32 %v61, %v73
    %v79 = vmul.f32 %v66, %v73
    %v80 = vmul.f32 %v71, %v73
    %81 = vset.pattern.permute.xlu0 1
    %82 = vperm.xlu0 %81, %v31
    %v83 = vpop.permute.xlu0 %82
    %85 = vset.pattern.permute.xlu0 1
    %86 = vperm.xlu0 %85, %v32
    %v87 = vpop.permute.xlu0 %86
    %89 = vset.pattern.permute.xlu0 1
    %90 = vperm.xlu0 %89, %v33
    %v91 = vpop.permute.xlu0 %90
    %93 = vset.pattern.permute.xlu0 1
    %94 = vperm.xlu0 %93, %v34
    %v95 = vpop.permute.xlu0 %94
    %97 = vset.pattern.permute.xlu0 1
    %98 = vperm.xlu0 %97, %v35
    %v99 = vpop.permute.xlu0 %98
    %101 = vset.pattern.permute.xlu0 1
    %102 = vperm.xlu0 %101, %v36
    %v103 = vpop.permute.xlu0 %102
    %105 = vset.pattern.permute.xlu0 1
    %106 = vperm.xlu0 %105, %v37
    %v107 = vpop.permute.xlu0 %106
    %v109 = vperm.slane %v30, 0
    %v110 = vmul.f32 %v83, %v109
    %v111 = vmul.f32 %v87, %v109
    %v112 = vmul.f32 %v91, %v109
    %v113 = vmul.f32 %v95, %v109
    %v114 = vmul.f32 %v99, %v109
    %v115 = vmul.f32 %v103, %v109
    %v116 = vmul.f32 %v107, %v109
    %v117 = vadd.f32 %v74, %v110
    %v118 = vadd.f32 %v75, %v111
    %v119 = vadd.f32 %v76, %v112
    %v120 = vadd.f32 %v77, %v113
    %v121 = vadd.f32 %v78, %v114
    %v122 = vadd.f32 %v79, %v115
    %v123 = vadd.f32 %v80, %v116
    %v124 = vld [vmem:[%s2] sm:$0xff]
    %v125 = vld [vmem:[%s2 + $0x8] sm:$0xff]
    %v126 = vld [vmem:[%s2 + $0x10] sm:$0xff]
    %v127 = vld [vmem:[%s2 + $0x18] sm:$0xff]
    %v128 = vld [vmem:[%s2 + $0x20] sm:$0xff]
    %v129 = vld [vmem:[%s2 + $0x28] sm:$0xff]
    %v130 = vld [vmem:[%s2 + $0x30] sm:$0x3]
    %132 = vset.pattern.permute.xlu0 0
    %133 = vperm.xlu0 %132, %v124
    %v134 = vpop.permute.xlu0 %133
    %137 = vset.pattern.permute.xlu0 0
    %138 = vperm.xlu0 %137, %v125
    %v139 = vpop.permute.xlu0 %138
    %142 = vset.pattern.permute.xlu0 0
    %143 = vperm.xlu0 %142, %v126
    %v144 = vpop.permute.xlu0 %143
    %147 = vset.pattern.permute.xlu0 0
    %148 = vperm.xlu0 %147, %v127
    %v149 = vpop.permute.xlu0 %148
    %152 = vset.pattern.permute.xlu0 0
    %153 = vperm.xlu0 %152, %v128
    %v154 = vpop.permute.xlu0 %153
    %157 = vset.pattern.permute.xlu0 0
    %158 = vperm.xlu0 %157, %v129
    %v159 = vpop.permute.xlu0 %158
    %162 = vset.pattern.permute.xlu0 0
    %163 = vperm.xlu0 %162, %v130
    %v164 = vpop.permute.xlu0 %163
    %v166 = vadd.f32 %v117, %v134
    %v167 = vadd.f32 %v118, %v139
    %v168 = vadd.f32 %v119, %v144
    %v169 = vadd.f32 %v120, %v149
    %v170 = vadd.f32 %v121, %v154
    %v171 = vadd.f32 %v122, %v159
    %v172 = vadd.f32 %v123, %v164
    %v173 = vtanh.pop %v166
    %v174 = vtanh.pop %v167
    %v175 = vtanh.pop %v168
    %v176 = vtanh.pop %v169
    %v177 = vtanh.pop %v170
    %v178 = vtanh.pop %v171
    %v179 = vtanh.pop %v172
    %v180 = vld [vmem:[%s3] sm:$0xff]
    %v181 = vld [vmem:[%s3 + $0x8] sm:$0xff]
    %v182 = vld [vmem:[%s3 + $0x10] sm:$0xff]
    %v183 = vld [vmem:[%s3 + $0x18] sm:$0xff]
    %v184 = vld [vmem:[%s3 + $0x20] sm:$0xff]
    %v185 = vld [vmem:[%s3 + $0x28] sm:$0xff]
    %v186 = vld [vmem:[%s3 + $0x30] sm:$0x3]
    %v187 = vld [vmem:[%s4] sm:$0xff]
    %v188 = vld [vmem:[%s4 + $0x8] sm:$0xff]
    %v189 = vld [vmem:[%s4 + $0x10] sm:$0xff]
    %v190 = vld [vmem:[%s4 + $0x18] sm:$0xff]
    %v191 = vld [vmem:[%s4 + $0x20] sm:$0xff]
    %v192 = vld [vmem:[%s4 + $0x28] sm:$0xff]
    %v193 = vld [vmem:[%s4 + $0x30] sm:$0x3]
    %195 = vset.pattern.permute.xlu0 0
    %196 = vperm.xlu0 %195, %v187
    %v197 = vpop.permute.xlu0 %196
    %200 = vset.pattern.permute.xlu0 0
    %201 = vperm.xlu0 %200, %v188
    %v202 = vpop.permute.xlu0 %201
    %205 = vset.pattern.permute.xlu0 0
    %206 = vperm.xlu0 %205, %v189
    %v207 = vpop.permute.xlu0 %206
    %210 = vset.pattern.permute.xlu0 0
    %211 = vperm.xlu0 %210, %v190
    %v212 = vpop.permute.xlu0 %211
    %215 = vset.pattern.permute.xlu0 0
    %216 = vperm.xlu0 %215, %v191
    %v217 = vpop.permute.xlu0 %216
    %220 = vset.pattern.permute.xlu0 0
    %221 = vperm.xlu0 %220, %v192
    %v222 = vpop.permute.xlu0 %221
    %225 = vset.pattern.permute.xlu0 0
    %226 = vperm.xlu0 %225, %v193
    %v227 = vpop.permute.xlu0 %226
    %vm229 = vcmask 408576
    %v231 = vsel %vm229, %v180, 0
    %v234 = vsel %vm229, %v181, 0
    %v237 = vsel %vm229, %v182, 0
    %v240 = vsel %vm229, %v183, 0
    %v243 = vsel %vm229, %v184, 0
    %v246 = vsel %vm229, %v185, 0
    %v249 = vsel %vm229, %v186, 0
    %vm251 = vcmask 1041408
    %v253 = vsel %vm251, %v179, 0
    %255 = vmatpush.msra.mxu0 0.0
    %256 = vmatpush.msra.mxu0 0.0
    %257 = vmatpush.msra.mxu0 0.0
    %258 = vmatpush.msra.mxu0 0.0
    %259 = vmatpush.msra.mxu0 0.0
    %260 = vmatpush.msra.mxu0 0.0
    %261 = vmatpush.msra.mxu0 0.0
    %262 = vmatpush.msra.mxu0 0.0
    %263 = vmatpush.msra.mxu0 0.0
    %v264 = vand.u32 %v253, 4294901760
    %265 = vmatpush.msra.mxu0 %v264
    %v266 = vand.u32 %v178, 4294901760
    %267 = vmatpush.msra.mxu0 %v266
    %v268 = vand.u32 %v177, 4294901760
    %269 = vmatpush.msra.mxu0 %v268
    %v270 = vand.u32 %v176, 4294901760
    %271 = vmatpush.msra.mxu0 %v270
    %v272 = vand.u32 %v175, 4294901760
    %273 = vmatpush.msra.mxu0 %v272
    %v274 = vand.u32 %v174, 4294901760
    %275 = vmatpush.msra.mxu0 %v274
    %v276 = vand.u32 %v173, 4294901760
    %277 = vmatpush.msra.mxu0 %v276
    %v278 = vand.u32 %v231, 4294901760
    %v279 = vsub.f32 %v231, %v278
    %v280 = vand.u32 %v279, 4294901760
    %v281 = vsub.f32 %v279, %v280
    %v282 = vand.u32 %v281, 4294901760
    %283 = vmatmul.f32.gmra.mxu0 %v282
    %v284 = vpop.f32.mrf.mxu0
    %v285 = vadd.f32 %v197, %v284
    %v286 = vand.u32 %v234, 4294901760
    %v287 = vsub.f32 %v234, %v286
    %v288 = vand.u32 %v287, 4294901760
    %v289 = vsub.f32 %v287, %v288
    %v290 = vand.u32 %v289, 4294901760
    %291 = vmatmul.f32.gmra.mxu0 %v290
    %v292 = vpop.f32.mrf.mxu0
    %v293 = vadd.f32 %v202, %v292
    %v294 = vand.u32 %v237, 4294901760
    %v295 = vsub.f32 %v237, %v294
    %v296 = vand.u32 %v295, 4294901760
    %v297 = vsub.f32 %v295, %v296
    %v298 = vand.u32 %v297, 4294901760
    %299 = vmatmul.f32.gmra.mxu0 %v298
    %v300 = vpop.f32.mrf.mxu0
    %v301 = vadd.f32 %v207, %v300
    %v302 = vand.u32 %v240, 4294901760
    %v303 = vsub.f32 %v240, %v302
    %v304 = vand.u32 %v303, 4294901760
    %v305 = vsub.f32 %v303, %v304
    %v306 = vand.u32 %v305, 4294901760
    %307 = vmatmul.f32.gmra.mxu0 %v306
    %v308 = vpop.f32.mrf.mxu0
    %v309 = vadd.f32 %v212, %v308
    %v310 = vand.u32 %v243, 4294901760
    %v311 = vsub.f32 %v243, %v310
    %v312 = vand.u32 %v311, 4294901760
    %v313 = vsub.f32 %v311, %v312
    %v314 = vand.u32 %v313, 4294901760
    %315 = vmatmul.f32.gmra.mxu0 %v314
    %v316 = vpop.f32.mrf.mxu0
    %v317 = vadd.f32 %v217, %v316
    %v318 = vand.u32 %v246, 4294901760
    %v319 = vsub.f32 %v246, %v318
    %v320 = vand.u32 %v319, 4294901760
    %v321 = vsub.f32 %v319, %v320
    %v322 = vand.u32 %v321, 4294901760
    %323 = vmatmul.f32.gmra.mxu0 %v322
    %v324 = vpop.f32.mrf.mxu0
    %v325 = vadd.f32 %v222, %v324
    %v326 = vand.u32 %v249, 4294901760
    %v327 = vsub.f32 %v249, %v326
    %v328 = vand.u32 %v327, 4294901760
    %v329 = vsub.f32 %v327, %v328
    %v330 = vand.u32 %v329, 4294901760
    %331 = vmatmul.f32.gmra.mxu0 %v330
    %v332 = vpop.f32.mrf.mxu0
    %v333 = vadd.f32 %v227, %v332
    %334 = vdwg.mxu0
    %335 = vmatpush.msra.mxu0 0.0
    %336 = vmatpush.msra.mxu0 0.0
    %337 = vmatpush.msra.mxu0 0.0
    %338 = vmatpush.msra.mxu0 0.0
    %339 = vmatpush.msra.mxu0 0.0
    %340 = vmatpush.msra.mxu0 0.0
    %341 = vmatpush.msra.mxu0 0.0
    %342 = vmatpush.msra.mxu0 0.0
    %343 = vmatpush.msra.mxu0 0.0
    %v344 = vand.u32 %v253, 4294901760
    %v345 = vsub.f32 %v253, %v344
    %v346 = vand.u32 %v345, 4294901760
    %v347 = vsub.f32 %v345, %v346
    %v348 = vand.u32 %v347, 4294901760
    %349 = vmatpush.msra.mxu0 %v348
    %v350 = vand.u32 %v178, 4294901760
    %v351 = vsub.f32 %v178, %v350
    %v352 = vand.u32 %v351, 4294901760
    %v353 = vsub.f32 %v351, %v352
    %v354 = vand.u32 %v353, 4294901760
    %355 = vmatpush.msra.mxu0 %v354
    %v356 = vand.u32 %v177, 4294901760
    %v357 = vsub.f32 %v177, %v356
    %v358 = vand.u32 %v357, 4294901760
    %v359 = vsub.f32 %v357, %v358
    %v360 = vand.u32 %v359, 4294901760
    %361 = vmatpush.msra.mxu0 %v360
    %v362 = vand.u32 %v176, 4294901760
    %v363 = vsub.f32 %v176, %v362
    %v364 = vand.u32 %v363, 4294901760
    %v365 = vsub.f32 %v363, %v364
    %v366 = vand.u32 %v365, 4294901760
    %367 = vmatpush.msra.mxu0 %v366
    %v368 = vand.u32 %v175, 4294901760
    %v369 = vsub.f32 %v175, %v368
    %v370 = vand.u32 %v369, 4294901760
    %v371 = vsub.f32 %v369, %v370
    %v372 = vand.u32 %v371, 4294901760
    %373 = vmatpush.msra.mxu0 %v372
    %v374 = vand.u32 %v174, 4294901760
    %v375 = vsub.f32 %v174, %v374
    %v376 = vand.u32 %v375, 4294901760
    %v377 = vsub.f32 %v375, %v376
    %v378 = vand.u32 %v377, 4294901760
    %379 = vmatpush.msra.mxu0 %v378
    %v380 = vand.u32 %v173, 4294901760
    %v381 = vsub.f32 %v173, %v380
    %v382 = vand.u32 %v381, 4294901760
    %v383 = vsub.f32 %v381, %v382
    %v384 = vand.u32 %v383, 4294901760
    %385 = vmatpush.msra.mxu0 %v384
    %v386 = vand.u32 %v231, 4294901760
    %387 = vmatmul.f32.gmra.mxu0 %v386
    %v388 = vpop.f32.mrf.mxu0
    %v389 = vadd.f32 %v285, %v388
    %v390 = vand.u32 %v234, 4294901760
    %391 = vmatmul.f32.gmra.mxu0 %v390
    %v392 = vpop.f32.mrf.mxu0
    %v393 = vadd.f32 %v293, %v392
    %v394 = vand.u32 %v237, 4294901760
    %395 = vmatmul.f32.gmra.mxu0 %v394
    %v396 = vpop.f32.mrf.mxu0
    %v397 = vadd.f32 %v301, %v396
    %v398 = vand.u32 %v240, 4294901760
    %399 = vmatmul.f32.gmra.mxu0 %v398
    %v400 = vpop.f32.mrf.mxu0
    %v401 = vadd.f32 %v309, %v400
    %v402 = vand.u32 %v243, 4294901760
    %403 = vmatmul.f32.gmra.mxu0 %v402
    %v404 = vpop.f32.mrf.mxu0
    %v405 = vadd.f32 %v317, %v404
    %v406 = vand.u32 %v246, 4294901760
    %407 = vmatmul.f32.gmra.mxu0 %v406
    %v408 = vpop.f32.mrf.mxu0
    %v409 = vadd.f32 %v325, %v408
    %v410 = vand.u32 %v249, 4294901760
    %411 = vmatmul.f32.gmra.mxu0 %v410
    %v412 = vpop.f32.mrf.mxu0
    %v413 = vadd.f32 %v333, %v412
    %414 = vdwg.mxu0
    %415 = vmatpush.msra.mxu0 0.0
    %416 = vmatpush.msra.mxu0 0.0
    %417 = vmatpush.msra.mxu0 0.0
    %418 = vmatpush.msra.mxu0 0.0
    %419 = vmatpush.msra.mxu0 0.0
    %420 = vmatpush.msra.mxu0 0.0
    %421 = vmatpush.msra.mxu0 0.0
    %422 = vmatpush.msra.mxu0 0.0
    %423 = vmatpush.msra.mxu0 0.0
    %v424 = vand.u32 %v253, 4294901760
    %v425 = vsub.f32 %v253, %v424
    %426 = vmatpush.msra.mxu0 %v425
    %v427 = vand.u32 %v178, 4294901760
    %v428 = vsub.f32 %v178, %v427
    %429 = vmatpush.msra.mxu0 %v428
    %v430 = vand.u32 %v177, 4294901760
    %v431 = vsub.f32 %v177, %v430
    %432 = vmatpush.msra.mxu0 %v431
    %v433 = vand.u32 %v176, 4294901760
    %v434 = vsub.f32 %v176, %v433
    %435 = vmatpush.msra.mxu0 %v434
    %v436 = vand.u32 %v175, 4294901760
    %v437 = vsub.f32 %v175, %v436
    %438 = vmatpush.msra.mxu0 %v437
    %v439 = vand.u32 %v174, 4294901760
    %v440 = vsub.f32 %v174, %v439
    %441 = vmatpush.msra.mxu0 %v440
    %v442 = vand.u32 %v173, 4294901760
    %v443 = vsub.f32 %v173, %v442
    %444 = vmatpush.msra.mxu0 %v443
    %v445 = vand.u32 %v231, 4294901760
    %v446 = vsub.f32 %v231, %v445
    %447 = vmatmul.f32.gmra.mxu0 %v446
    %v448 = vpop.f32.mrf.mxu0
    %v449 = vadd.f32 %v389, %v448
    %v450 = vand.u32 %v234, 4294901760
    %v451 = vsub.f32 %v234, %v450
    %452 = vmatmul.f32.gmra.mxu0 %v451
    %v453 = vpop.f32.mrf.mxu0
    %v454 = vadd.f32 %v393, %v453
    %v455 = vand.u32 %v237, 4294901760
    %v456 = vsub.f32 %v237, %v455
    %457 = vmatmul.f32.gmra.mxu0 %v456
    %v458 = vpop.f32.mrf.mxu0
    %v459 = vadd.f32 %v397, %v458
    %v460 = vand.u32 %v240, 4294901760
    %v461 = vsub.f32 %v240, %v460
    %462 = vmatmul.f32.gmra.mxu0 %v461
    %v463 = vpop.f32.mrf.mxu0
    %v464 = vadd.f32 %v401, %v463
    %v465 = vand.u32 %v243, 4294901760
    %v466 = vsub.f32 %v243, %v465
    %467 = vmatmul.f32.gmra.mxu0 %v466
    %v468 = vpop.f32.mrf.mxu0
    %v469 = vadd.f32 %v405, %v468
    %v470 = vand.u32 %v246, 4294901760
    %v471 = vsub.f32 %v246, %v470
    %472 = vmatmul.f32.gmra.mxu0 %v471
    %v473 = vpop.f32.mrf.mxu0
    %v474 = vadd.f32 %v409, %v473
    %v475 = vand.u32 %v249, 4294901760
    %v476 = vsub.f32 %v249, %v475
    %477 = vmatmul.f32.gmra.mxu0 %v476
    %v478 = vpop.f32.mrf.mxu0
    %v479 = vadd.f32 %v413, %v478
    %480 = vdwg.mxu0
    %481 = vmatpush.msra.mxu0 0.0
    %482 = vmatpush.msra.mxu0 0.0
    %483 = vmatpush.msra.mxu0 0.0
    %484 = vmatpush.msra.mxu0 0.0
    %485 = vmatpush.msra.mxu0 0.0
    %486 = vmatpush.msra.mxu0 0.0
    %487 = vmatpush.msra.mxu0 0.0
    %488 = vmatpush.msra.mxu0 0.0
    %489 = vmatpush.msra.mxu0 0.0
    %v490 = vand.u32 %v253, 4294901760
    %491 = vmatpush.msra.mxu0 %v490
    %v492 = vand.u32 %v178, 4294901760
    %493 = vmatpush.msra.mxu0 %v492
    %v494 = vand.u32 %v177, 4294901760
    %495 = vmatpush.msra.mxu0 %v494
    %v496 = vand.u32 %v176, 4294901760
    %497 = vmatpush.msra.mxu0 %v496
    %v498 = vand.u32 %v175, 4294901760
    %499 = vmatpush.msra.mxu0 %v498
    %v500 = vand.u32 %v174, 4294901760
    %501 = vmatpush.msra.mxu0 %v500
    %v502 = vand.u32 %v173, 4294901760
    %503 = vmatpush.msra.mxu0 %v502
    %v504 = vand.u32 %v231, 4294901760
    %v505 = vsub.f32 %v231, %v504
    %v506 = vand.u32 %v505, 4294901760
    %507 = vmatmul.f32.gmra.mxu0 %v506
    %v508 = vpop.f32.mrf.mxu0
    %v509 = vadd.f32 %v449, %v508
    %v510 = vand.u32 %v234, 4294901760
    %v511 = vsub.f32 %v234, %v510
    %v512 = vand.u32 %v511, 4294901760
    %513 = vmatmul.f32.gmra.mxu0 %v512
    %v514 = vpop.f32.mrf.mxu0
    %v515 = vadd.f32 %v454, %v514
    %v516 = vand.u32 %v237, 4294901760
    %v517 = vsub.f32 %v237, %v516
    %v518 = vand.u32 %v517, 4294901760
    %519 = vmatmul.f32.gmra.mxu0 %v518
    %v520 = vpop.f32.mrf.mxu0
    %v521 = vadd.f32 %v459, %v520
    %v522 = vand.u32 %v240, 4294901760
    %v523 = vsub.f32 %v240, %v522
    %v524 = vand.u32 %v523, 4294901760
    %525 = vmatmul.f32.gmra.mxu0 %v524
    %v526 = vpop.f32.mrf.mxu0
    %v527 = vadd.f32 %v464, %v526
    %v528 = vand.u32 %v243, 4294901760
    %v529 = vsub.f32 %v243, %v528
    %v530 = vand.u32 %v529, 4294901760
    %531 = vmatmul.f32.gmra.mxu0 %v530
    %v532 = vpop.f32.mrf.mxu0
    %v533 = vadd.f32 %v469, %v532
    %v534 = vand.u32 %v246, 4294901760
    %v535 = vsub.f32 %v246, %v534
    %v536 = vand.u32 %v535, 4294901760
    %537 = vmatmul.f32.gmra.mxu0 %v536
    %v538 = vpop.f32.mrf.mxu0
    %v539 = vadd.f32 %v474, %v538
    %v540 = vand.u32 %v249, 4294901760
    %v541 = vsub.f32 %v249, %v540
    %v542 = vand.u32 %v541, 4294901760
    %543 = vmatmul.f32.gmra.mxu0 %v542
    %v544 = vpop.f32.mrf.mxu0
    %v545 = vadd.f32 %v479, %v544
    %546 = vdwg.mxu0
    %547 = vmatpush.msra.mxu0 0.0
    %548 = vmatpush.msra.mxu0 0.0
    %549 = vmatpush.msra.mxu0 0.0
    %550 = vmatpush.msra.mxu0 0.0
    %551 = vmatpush.msra.mxu0 0.0
    %552 = vmatpush.msra.mxu0 0.0
    %553 = vmatpush.msra.mxu0 0.0
    %554 = vmatpush.msra.mxu0 0.0
    %555 = vmatpush.msra.mxu0 0.0
    %v556 = vand.u32 %v253, 4294901760
    %v557 = vsub.f32 %v253, %v556
    %v558 = vand.u32 %v557, 4294901760
    %559 = vmatpush.msra.mxu0 %v558
    %v560 = vand.u32 %v178, 4294901760
    %v561 = vsub.f32 %v178, %v560
    %v562 = vand.u32 %v561, 4294901760
    %563 = vmatpush.msra.mxu0 %v562
    %v564 = vand.u32 %v177, 4294901760
    %v565 = vsub.f32 %v177, %v564
    %v566 = vand.u32 %v565, 4294901760
    %567 = vmatpush.msra.mxu0 %v566
    %v568 = vand.u32 %v176, 4294901760
    %v569 = vsub.f32 %v176, %v568
    %v570 = vand.u32 %v569, 4294901760
    %571 = vmatpush.msra.mxu0 %v570
    %v572 = vand.u32 %v175, 4294901760
    %v573 = vsub.f32 %v175, %v572
    %v574 = vand.u32 %v573, 4294901760
    %575 = vmatpush.msra.mxu0 %v574
    %v576 = vand.u32 %v174, 4294901760
    %v577 = vsub.f32 %v174, %v576
    %v578 = vand.u32 %v577, 4294901760
    %579 = vmatpush.msra.mxu0 %v578
    %v580 = vand.u32 %v173, 4294901760
    %v581 = vsub.f32 %v173, %v580
    %v582 = vand.u32 %v581, 4294901760
    %583 = vmatpush.msra.mxu0 %v582
    %v584 = vand.u32 %v231, 4294901760
    %585 = vmatmul.f32.gmra.mxu0 %v584
    %v586 = vpop.f32.mrf.mxu0
    %v587 = vadd.f32 %v509, %v586
    %v588 = vand.u32 %v234, 4294901760
    %589 = vmatmul.f32.gmra.mxu0 %v588
    %v590 = vpop.f32.mrf.mxu0
    %v591 = vadd.f32 %v515, %v590
    %v592 = vand.u32 %v237, 4294901760
    %593 = vmatmul.f32.gmra.mxu0 %v592
    %v594 = vpop.f32.mrf.mxu0
    %v595 = vadd.f32 %v521, %v594
    %v596 = vand.u32 %v240, 4294901760
    %597 = vmatmul.f32.gmra.mxu0 %v596
    %v598 = vpop.f32.mrf.mxu0
    %v599 = vadd.f32 %v527, %v598
    %v600 = vand.u32 %v243, 4294901760
    %601 = vmatmul.f32.gmra.mxu0 %v600
    %v602 = vpop.f32.mrf.mxu0
    %v603 = vadd.f32 %v533, %v602
    %v604 = vand.u32 %v246, 4294901760
    %605 = vmatmul.f32.gmra.mxu0 %v604
    %v606 = vpop.f32.mrf.mxu0
    %v607 = vadd.f32 %v539, %v606
    %v608 = vand.u32 %v249, 4294901760
    %609 = vmatmul.f32.gmra.mxu0 %v608
    %v610 = vpop.f32.mrf.mxu0
    %v611 = vadd.f32 %v545, %v610
    %612 = vdwg.mxu0
    %613 = vmatpush.msra.mxu0 0.0
    %614 = vmatpush.msra.mxu0 0.0
    %615 = vmatpush.msra.mxu0 0.0
    %616 = vmatpush.msra.mxu0 0.0
    %617 = vmatpush.msra.mxu0 0.0
    %618 = vmatpush.msra.mxu0 0.0
    %619 = vmatpush.msra.mxu0 0.0
    %620 = vmatpush.msra.mxu0 0.0
    %621 = vmatpush.msra.mxu0 0.0
    %v622 = vand.u32 %v253, 4294901760
    %623 = vmatpush.msra.mxu0 %v622
    %v624 = vand.u32 %v178, 4294901760
    %625 = vmatpush.msra.mxu0 %v624
    %v626 = vand.u32 %v177, 4294901760
    %627 = vmatpush.msra.mxu0 %v626
    %v628 = vand.u32 %v176, 4294901760
    %629 = vmatpush.msra.mxu0 %v628
    %v630 = vand.u32 %v175, 4294901760
    %631 = vmatpush.msra.mxu0 %v630
    %v632 = vand.u32 %v174, 4294901760
    %633 = vmatpush.msra.mxu0 %v632
    %v634 = vand.u32 %v173, 4294901760
    %635 = vmatpush.msra.mxu0 %v634
    %v636 = vand.u32 %v231, 4294901760
    %637 = vmatmul.f32.gmra.mxu0 %v636
    %v638 = vpop.f32.mrf.mxu0
    %v639 = vadd.f32 %v587, %v638
    %v640 = vand.u32 %v234, 4294901760
    %641 = vmatmul.f32.gmra.mxu0 %v640
    %v642 = vpop.f32.mrf.mxu0
    %v643 = vadd.f32 %v591, %v642
    %v644 = vand.u32 %v237, 4294901760
    %645 = vmatmul.f32.gmra.mxu0 %v644
    %v646 = vpop.f32.mrf.mxu0
    %v647 = vadd.f32 %v595, %v646
    %v648 = vand.u32 %v240, 4294901760
    %649 = vmatmul.f32.gmra.mxu0 %v648
    %v650 = vpop.f32.mrf.mxu0
    %v651 = vadd.f32 %v599, %v650
    %v652 = vand.u32 %v243, 4294901760
    %653 = vmatmul.f32.gmra.mxu0 %v652
    %v654 = vpop.f32.mrf.mxu0
    %v655 = vadd.f32 %v603, %v654
    %v656 = vand.u32 %v246, 4294901760
    %657 = vmatmul.f32.gmra.mxu0 %v656
    %v658 = vpop.f32.mrf.mxu0
    %v659 = vadd.f32 %v607, %v658
    %v660 = vand.u32 %v249, 4294901760
    %661 = vmatmul.f32.gmra.mxu0 %v660
    %v662 = vpop.f32.mrf.mxu0
    %v663 = vadd.f32 %v611, %v662
    %664 = vdwg.mxu0
    %v665 = vtanh.pop %v639
    %v666 = vtanh.pop %v643
    %v667 = vtanh.pop %v647
    %v668 = vtanh.pop %v651
    %v669 = vtanh.pop %v655
    %v670 = vtanh.pop %v659
    %v671 = vtanh.pop %v663
    %v672 = vld [vmem:[%s5] sm:$0x1]
    %v673 = vld [vmem:[#allocation2] sm:$0x1]
    %675 = vset.pattern.permute.xlu0 0
    %676 = vperm.xlu0 %675, %v673
    %v677 = vpop.permute.xlu0 %676
    %v679 = vperm.slane %v677, 0
    %v681 = vsel %vm229, %v672, 0
    %v684 = vsel %vm251, %v671, 0
    %686 = vmatpush.msra.mxu0 0.0
    %687 = vmatpush.msra.mxu0 0.0
    %688 = vmatpush.msra.mxu0 0.0
    %689 = vmatpush.msra.mxu0 0.0
    %690 = vmatpush.msra.mxu0 0.0
    %691 = vmatpush.msra.mxu0 0.0
    %692 = vmatpush.msra.mxu0 0.0
    %693 = vmatpush.msra.mxu0 0.0
    %694 = vmatpush.msra.mxu0 0.0
    %v695 = vand.u32 %v684, 4294901760
    %696 = vmatpush.msra.mxu0 %v695
    %v697 = vand.u32 %v670, 4294901760
    %698 = vmatpush.msra.mxu0 %v697
    %v699 = vand.u32 %v669, 4294901760
    %700 = vmatpush.msra.mxu0 %v699
    %v701 = vand.u32 %v668, 4294901760
    %702 = vmatpush.msra.mxu0 %v701
    %v703 = vand.u32 %v667, 4294901760
    %704 = vmatpush.msra.mxu0 %v703
    %v705 = vand.u32 %v666, 4294901760
    %706 = vmatpush.msra.mxu0 %v705
    %v707 = vand.u32 %v665, 4294901760
    %708 = vmatpush.msra.mxu0 %v707
    %v709 = vand.u32 %v681, 4294901760
    %v710 = vsub.f32 %v681, %v709
    %v711 = vand.u32 %v710, 4294901760
    %v712 = vsub.f32 %v710, %v711
    %v713 = vand.u32 %v712, 4294901760
    %714 = vmatmul.f32.gmra.mxu0 %v713
    %v715 = vpop.f32.mrf.mxu0
    %v716 = vadd.f32 %v679, %v715
    %717 = vdwg.mxu0
    %718 = vmatpush.msra.mxu0 0.0
    %719 = vmatpush.msra.mxu0 0.0
    %720 = vmatpush.msra.mxu0 0.0
    %721 = vmatpush.msra.mxu0 0.0
    %722 = vmatpush.msra.mxu0 0.0
    %723 = vmatpush.msra.mxu0 0.0
    %724 = vmatpush.msra.mxu0 0.0
    %725 = vmatpush.msra.mxu0 0.0
    %726 = vmatpush.msra.mxu0 0.0
    %v727 = vand.u32 %v684, 4294901760
    %v728 = vsub.f32 %v684, %v727
    %v729 = vand.u32 %v728, 4294901760
    %v730 = vsub.f32 %v728, %v729
    %v731 = vand.u32 %v730, 4294901760
    %732 = vmatpush.msra.mxu0 %v731
    %v733 = vand.u32 %v670, 4294901760
    %v734 = vsub.f32 %v670, %v733
    %v735 = vand.u32 %v734, 4294901760
    %v736 = vsub.f32 %v734, %v735
    %v737 = vand.u32 %v736, 4294901760
    %738 = vmatpush.msra.mxu0 %v737
    %v739 = vand.u32 %v669, 4294901760
    %v740 = vsub.f32 %v669, %v739
    %v741 = vand.u32 %v740, 4294901760
    %v742 = vsub.f32 %v740, %v741
    %v743 = vand.u32 %v742, 4294901760
    %744 = vmatpush.msra.mxu0 %v743
    %v745 = vand.u32 %v668, 4294901760
    %v746 = vsub.f32 %v668, %v745
    %v747 = vand.u32 %v746, 4294901760
    %v748 = vsub.f32 %v746, %v747
    %v749 = vand.u32 %v748, 4294901760
    %750 = vmatpush.msra.mxu0 %v749
    %v751 = vand.u32 %v667, 4294901760
    %v752 = vsub.f32 %v667, %v751
    %v753 = vand.u32 %v752, 4294901760
    %v754 = vsub.f32 %v752, %v753
    %v755 = vand.u32 %v754, 4294901760
    %756 = vmatpush.msra.mxu0 %v755
    %v757 = vand.u32 %v666, 4294901760
    %v758 = vsub.f32 %v666, %v757
    %v759 = vand.u32 %v758, 4294901760
    %v760 = vsub.f32 %v758, %v759
    %v761 = vand.u32 %v760, 4294901760
    %762 = vmatpush.msra.mxu0 %v761
    %v763 = vand.u32 %v665, 4294901760
    %v764 = vsub.f32 %v665, %v763
    %v765 = vand.u32 %v764, 4294901760
    %v766 = vsub.f32 %v764, %v765
    %v767 = vand.u32 %v766, 4294901760
    %768 = vmatpush.msra.mxu0 %v767
    %v769 = vand.u32 %v681, 4294901760
    %770 = vmatmul.f32.gmra.mxu0 %v769
    %v771 = vpop.f32.mrf.mxu0
    %v772 = vadd.f32 %v716, %v771
    %773 = vdwg.mxu0
    %774 = vmatpush.msra.mxu0 0.0
    %775 = vmatpush.msra.mxu0 0.0
    %776 = vmatpush.msra.mxu0 0.0
    %777 = vmatpush.msra.mxu0 0.0
    %778 = vmatpush.msra.mxu0 0.0
    %779 = vmatpush.msra.mxu0 0.0
    %780 = vmatpush.msra.mxu0 0.0
    %781 = vmatpush.msra.mxu0 0.0
    %782 = vmatpush.msra.mxu0 0.0
    %v783 = vand.u32 %v684, 4294901760
    %v784 = vsub.f32 %v684, %v783
    %785 = vmatpush.msra.mxu0 %v784
    %v786 = vand.u32 %v670, 4294901760
    %v787 = vsub.f32 %v670, %v786
    %788 = vmatpush.msra.mxu0 %v787
    %v789 = vand.u32 %v669, 4294901760
    %v790 = vsub.f32 %v669, %v789
    %791 = vmatpush.msra.mxu0 %v790
    %v792 = vand.u32 %v668, 4294901760
    %v793 = vsub.f32 %v668, %v792
    %794 = vmatpush.msra.mxu0 %v793
    %v795 = vand.u32 %v667, 4294901760
    %v796 = vsub.f32 %v667, %v795
    %797 = vmatpush.msra.mxu0 %v796
    %v798 = vand.u32 %v666, 4294901760
    %v799 = vsub.f32 %v666, %v798
    %800 = vmatpush.msra.mxu0 %v799
    %v801 = vand.u32 %v665, 4294901760
    %v802 = vsub.f32 %v665, %v801
    %803 = vmatpush.msra.mxu0 %v802
    %v804 = vand.u32 %v681, 4294901760
    %v805 = vsub.f32 %v681, %v804
    %806 = vmatmul.f32.gmra.mxu0 %v805
    %v807 = vpop.f32.mrf.mxu0
    %v808 = vadd.f32 %v772, %v807
    %809 = vdwg.mxu0
    %810 = vmatpush.msra.mxu0 0.0
    %811 = vmatpush.msra.mxu0 0.0
    %812 = vmatpush.msra.mxu0 0.0
    %813 = vmatpush.msra.mxu0 0.0
    %814 = vmatpush.msra.mxu0 0.0
    %815 = vmatpush.msra.mxu0 0.0
    %816 = vmatpush.msra.mxu0 0.0
    %817 = vmatpush.msra.mxu0 0.0
    %818 = vmatpush.msra.mxu0 0.0
    %v819 = vand.u32 %v684, 4294901760
    %820 = vmatpush.msra.mxu0 %v819
    %v821 = vand.u32 %v670, 4294901760
    %822 = vmatpush.msra.mxu0 %v821
    %v823 = vand.u32 %v669, 4294901760
    %824 = vmatpush.msra.mxu0 %v823
    %v825 = vand.u32 %v668, 4294901760
    %826 = vmatpush.msra.mxu0 %v825
    %v827 = vand.u32 %v667, 4294901760
    %828 = vmatpush.msra.mxu0 %v827
    %v829 = vand.u32 %v666, 4294901760
    %830 = vmatpush.msra.mxu0 %v829
    %v831 = vand.u32 %v665, 4294901760
    %832 = vmatpush.msra.mxu0 %v831
    %v833 = vand.u32 %v681, 4294901760
    %v834 = vsub.f32 %v681, %v833
    %v835 = vand.u32 %v834, 4294901760
    %836 = vmatmul.f32.gmra.mxu0 %v835
    %v837 = vpop.f32.mrf.mxu0
    %v838 = vadd.f32 %v808, %v837
    %839 = vdwg.mxu0
    %840 = vmatpush.msra.mxu0 0.0
    %841 = vmatpush.msra.mxu0 0.0
    %842 = vmatpush.msra.mxu0 0.0
    %843 = vmatpush.msra.mxu0 0.0
    %844 = vmatpush.msra.mxu0 0.0
    %845 = vmatpush.msra.mxu0 0.0
    %846 = vmatpush.msra.mxu0 0.0
    %847 = vmatpush.msra.mxu0 0.0
    %848 = vmatpush.msra.mxu0 0.0
    %v849 = vand.u32 %v684, 4294901760
    %v850 = vsub.f32 %v684, %v849
    %v851 = vand.u32 %v850, 4294901760
    %852 = vmatpush.msra.mxu0 %v851
    %v853 = vand.u32 %v670, 4294901760
    %v854 = vsub.f32 %v670, %v853
    %v855 = vand.u32 %v854, 4294901760
    %856 = vmatpush.msra.mxu0 %v855
    %v857 = vand.u32 %v669, 4294901760
    %v858 = vsub.f32 %v669, %v857
    %v859 = vand.u32 %v858, 4294901760
    %860 = vmatpush.msra.mxu0 %v859
    %v861 = vand.u32 %v668, 4294901760
    %v862 = vsub.f32 %v668, %v861
    %v863 = vand.u32 %v862, 4294901760
    %864 = vmatpush.msra.mxu0 %v863
    %v865 = vand.u32 %v667, 4294901760
    %v866 = vsub.f32 %v667, %v865
    %v867 = vand.u32 %v866, 4294901760
    %868 = vmatpush.msra.mxu0 %v867
    %v869 = vand.u32 %v666, 4294901760
    %v870 = vsub.f32 %v666, %v869
    %v871 = vand.u32 %v870, 4294901760
    %872 = vmatpush.msra.mxu0 %v871
    %v873 = vand.u32 %v665, 4294901760
    %v874 = vsub.f32 %v665, %v873
    %v875 = vand.u32 %v874, 4294901760
    %876 = vmatpush.msra.mxu0 %v875
    %v877 = vand.u32 %v681, 4294901760
    %878 = vmatmul.f32.gmra.mxu0 %v877
    %v879 = vpop.f32.mrf.mxu0
    %v880 = vadd.f32 %v838, %v879
    %881 = vdwg.mxu0
    %882 = vmatpush.msra.mxu0 0.0
    %883 = vmatpush.msra.mxu0 0.0
    %884 = vmatpush.msra.mxu0 0.0
    %885 = vmatpush.msra.mxu0 0.0
    %886 = vmatpush.msra.mxu0 0.0
    %887 = vmatpush.msra.mxu0 0.0
    %888 = vmatpush.msra.mxu0 0.0
    %889 = vmatpush.msra.mxu0 0.0
    %890 = vmatpush.msra.mxu0 0.0
    %v891 = vand.u32 %v684, 4294901760
    %892 = vmatpush.msra.mxu0 %v891
    %v893 = vand.u32 %v670, 4294901760
    %894 = vmatpush.msra.mxu0 %v893
    %v895 = vand.u32 %v669, 4294901760
    %896 = vmatpush.msra.mxu0 %v895
    %v897 = vand.u32 %v668, 4294901760
    %898 = vmatpush.msra.mxu0 %v897
    %v899 = vand.u32 %v667, 4294901760
    %900 = vmatpush.msra.mxu0 %v899
    %v901 = vand.u32 %v666, 4294901760
    %902 = vmatpush.msra.mxu0 %v901
    %v903 = vand.u32 %v665, 4294901760
    %904 = vmatpush.msra.mxu0 %v903
    %v905 = vand.u32 %v681, 4294901760
    %906 = vmatmul.f32.gmra.mxu0 %v905
    %v907 = vpop.f32.mrf.mxu0
    %v908 = vadd.f32 %v880, %v907
    %909 = vdwg.mxu0
    %910 = vst [vmem:[#allocation3] sm:$0x1] %v908
    // Predicated region
    $region30: #{tpu_custom_call.1} parent=1 // pred_check
      _
    $region31: #{tpu_custom_call.1} parent=1 // pred_check_branch
      %912 = sbr.rel (0) target = $region33
    $region32: #{tpu_custom_call.1} parent=1 // pred_region
      %914 = vsyncadd [#allocation4], 0
      %s916 = sshll.u32 [#allocation3], 4
      %s917 = int_to_ptr.vmem [resolvable:$true] %s916
      %s918 = sshll.u32 %s7, 4
      %s919 = int_to_ptr.hbm [resolvable:$true] %s918
      %921 = dma.vmem_to_hbm [thread:$0]  %s917, 16, %s919, [#allocation4]
    $region33: #{tpu_custom_call.1} parent=1 // pred_fallthru
      _
    // Predicated region
    $region34: #{tpu_custom_call.1} parent=1 // pred_check
      _
    $region35: #{tpu_custom_call.1} parent=1 // pred_check_branch
      %923 = sbr.rel (0) target = $region37
    $region36: #{tpu_custom_call.1} parent=1 // pred_region
      %925 = dma.done [#allocation4], 16
    $region37: #{tpu_custom_call.1} parent=1 // pred_fallthru
      _
    %926 = vsyncpa [#allocation4], 1

</llo_original>
